<compile_context>
chip_gen: v7x
topology: tpu7x:2x2x1
jax: 0.10.0
libtpu: 0.0.40
codegen_flags: <defaults>
</compile_context>

<pallas_src>
import jax
import jax.numpy as jnp
import numpy as np
from jax import lax
from jax.experimental import pallas as pl
from jax.experimental.pallas import tpu as pltpu


def ngram_kernel(idx_ref, emb_ref, w1_ref, b1_ref, w2_ref, b2_ref, o_ref):
    """idx:(TB,C) i32  emb:(V,D) bf16  w1:(C,D,H) bf16  b1:(1,H) f32
       w2:(H,V) bf16   b2:(1,V) f32   ->  o:(TB,V) f32 log-probs."""
    idx = idx_ref[...]                       # (TB, C) int32
    emb = emb_ref[...]                       # (V, D)  bf16
    TB, C = idx.shape
    V, D = emb.shape
    H = w1_ref.shape[2]

    # iota over the vocab axis, hoisted out of the context loop.
    vocab_iota = lax.broadcasted_iota(jnp.int32, (TB, V), 1)

    # hidden = b1 + sum_c onehot(idx[:, c]) @ emb @ w1[c]   (all MXU matmuls)
    acc = jnp.zeros((TB, H), jnp.float32)
    for c in range(C):                       # C is tiny & static -> unrolled
        ids = idx[:, c:c + 1]                # (TB, 1)
        onehot = (vocab_iota == ids).astype(emb.dtype)          # (TB, V) bf16
        feats_c = jnp.dot(onehot, emb,
                          preferred_element_type=jnp.float32)   # (TB, D) f32 (exact rows)
        acc = acc + jnp.dot(feats_c.astype(emb.dtype), w1_ref[c],
                            preferred_element_type=jnp.float32)  # (TB, H) f32

    h = jnp.maximum(acc + b1_ref[...], 0.0)                      # ReLU, f32

    logits = jnp.dot(h.astype(w2_ref.dtype), w2_ref[...],
                     preferred_element_type=jnp.float32) + b2_ref[...]

    # LogSoftmax over the vocab axis (dim=1), numerically stable, f32.
    m = jnp.max(logits, axis=-1, keepdims=True)
    s = logits - m
    lse = jnp.log(jnp.sum(jnp.exp(s), axis=-1, keepdims=True))
    o_ref[...] = (s - lse).astype(o_ref.dtype)


def prepare_params(emb, w1, b1, w2, b2, context_size, dim):
    """One-time formatting: bf16 weights, (C,D,H) first linear, 2-D f32 biases."""
    C, D = context_size, dim
    H = w1.shape[1]
    V = w2.shape[1]
    return (
        emb.astype(jnp.bfloat16),                        # (V, D)
        w1.reshape(C, D, H).astype(jnp.bfloat16),        # (C, D, H)
        b1.reshape(1, H).astype(jnp.float32),            # (1, H)
        w2.astype(jnp.bfloat16),                         # (H, V)
        b2.reshape(1, V).astype(jnp.float32),            # (1, V)
    )


def ngram_forward(idx, params, *, block_b=512):
    """Full NgramModel forward. idx: (B, context_size) integer indices."""
    emb, w1, b1, w2, b2 = params
    V, D = emb.shape
    C = w1.shape[0]
    H = w1.shape[2]
    B = idx.shape[0]

    # Batch tile: multiple of 8 sublanes, capped so tiles fit all VMEM budgets.
    TB = min(block_b, max(B, 8))
    TB = ((TB + 7) // 8) * 8
    Bp = ((B + TB - 1) // TB) * TB
    idx = idx.astype(jnp.int32)
    if Bp != B:
        idx = jnp.pad(idx, ((0, Bp - B), (0, 0)))        # pad rows gather index 0
    nb = Bp // TB

    cost = pl.CostEstimate(
        flops=2 * Bp * (C * V * D + C * D * H + H * V),
        transcendentals=Bp * (V + 1),
        bytes_accessed=(idx.size * 4 + emb.size * 2 + w1.size * 2
                        + w2.size * 2 + b1.size * 4 + b2.size * 4 + Bp * V * 4),
    )

    out = pl.pallas_call(
        ngram_kernel,
        out_shape=jax.ShapeDtypeStruct((Bp, V), jnp.float32),
        grid=(nb,),
        in_specs=[
            pl.BlockSpec((TB, C), lambda i: (i, 0)),        # idx: tiled over batch
            pl.BlockSpec((V, D), lambda i: (0, 0)),         # emb: resident
            pl.BlockSpec((C, D, H), lambda i: (0, 0, 0)),   # w1:  resident
            pl.BlockSpec((1, H), lambda i: (0, 0)),         # b1:  resident
            pl.BlockSpec((H, V), lambda i: (0, 0)),         # w2:  resident
            pl.BlockSpec((1, V), lambda i: (0, 0)),         # b2:  resident
        ],
        out_specs=pl.BlockSpec((TB, V), lambda i: (i, 0)),
        compiler_params=pltpu.CompilerParams(
            dimension_semantics=("parallel",),              # megacore on v7x
        ),
        cost_estimate=cost,
    )(idx, emb, w1, b1, w2, b2)
    return out[:B]


if __name__ == "__main__":
    # Module hyper-parameters (shapes from NgramModel.__init__)
    word_number = 256      # vocab size V
    dim = 32               # embedding dim D
    context_size = 2       # C
    hidden = 128           # fixed by the module definition
    batch = 8

    key = jax.random.PRNGKey(0)
    k_idx, k_emb, k_w1, k_b1, k_w2, k_b2 = jax.random.split(key, 6)

    emb = jax.random.normal(k_emb, (word_number, dim), dtype=jnp.float32) * 0.1
    w1 = jax.random.normal(k_w1, (context_size * dim, hidden), dtype=jnp.float32) * 0.05
    b1 = jax.random.normal(k_b1, (hidden,), dtype=jnp.float32) * 0.01
    w2 = jax.random.normal(k_w2, (hidden, word_number), dtype=jnp.float32) * 0.05
    b2 = jax.random.normal(k_b2, (word_number,), dtype=jnp.float32) * 0.01

    # Example input: integer word indices, shape (batch, context_size)
    idx = jax.random.randint(k_idx, (batch, context_size), 0, word_number, dtype=jnp.int32)

    params = prepare_params(emb, w1, b1, w2, b2, context_size, dim)
    out = jax.block_until_ready(ngram_forward(idx, params))

    # Pure-JAX reference at the same (bf16-weight, f32-accumulate) precision.
    hi = jax.lax.Precision.HIGHEST
    emb_q = emb.astype(jnp.bfloat16).astype(jnp.float32)
    w1_q = w1.astype(jnp.bfloat16).astype(jnp.float32)
    w2_q = w2.astype(jnp.bfloat16).astype(jnp.float32)
    feats_ref = jnp.take(emb_q, idx.reshape(-1), axis=0).reshape(-1, context_size * dim)
    h_ref = jnp.maximum(jnp.dot(feats_ref, w1_q, precision=hi) + b1, 0.0)
    h_ref = h_ref.astype(jnp.bfloat16).astype(jnp.float32)
    logits_ref = jnp.dot(h_ref, w2_q, precision=hi) + b2
    ref = jax.nn.log_softmax(logits_ref, axis=1)

    assert out.shape == (batch, word_number)
    err = float(np.max(np.abs(np.asarray(out) - np.asarray(ref))))
    assert np.allclose(np.asarray(out), np.asarray(ref), atol=2e-3, rtol=2e-3), err

    print("KERNEL_OK")
</pallas_src>

<mosaic_0001>
module attributes {stable_mosaic.version = 11 : i64} {
  func.func @ngram_kernel(%arg0: i32, %arg1: memref<8x2xi32, #tpu.memory_space<vmem>>, %arg2: memref<256x32xbf16, #tpu.memory_space<vmem>>, %arg3: memref<2x32x128xbf16, #tpu.memory_space<vmem>>, %arg4: memref<1x128xf32, #tpu.memory_space<vmem>>, %arg5: memref<128x256xbf16, #tpu.memory_space<vmem>>, %arg6: memref<1x256xf32, #tpu.memory_space<vmem>>, %arg7: memref<8x256xf32, #tpu.memory_space<vmem>>) attributes {dimension_semantics = [#tpu.dimension_semantics<parallel>], iteration_bounds = array<i64: 1>, scalar_prefetch = 0 : i64, scratch_operands = 0 : i64, tpu.core_type = #tpu.core_type<tc>, window_params = [{transform_indices = @transform_0, window_bounds = array<i64: 8, 2>}, {pipeline_mode = #tpu.pipeline_mode<synchronous>, transform_indices = @transform_1, window_bounds = array<i64: 256, 32>}, {pipeline_mode = #tpu.pipeline_mode<synchronous>, transform_indices = @transform_2, window_bounds = array<i64: 2, 32, 128>}, {pipeline_mode = #tpu.pipeline_mode<synchronous>, transform_indices = @transform_3, window_bounds = array<i64: 1, 128>}, {pipeline_mode = #tpu.pipeline_mode<synchronous>, transform_indices = @transform_4, window_bounds = array<i64: 128, 256>}, {pipeline_mode = #tpu.pipeline_mode<synchronous>, transform_indices = @transform_5, window_bounds = array<i64: 1, 256>}, {transform_indices = @transform_6, window_bounds = array<i64: 8, 256>}]} {
    %c0 = arith.constant 0 : index
    %c0_0 = arith.constant 0 : index
    %0 = vector.load %arg1[%c0, %c0_0] : memref<8x2xi32, #tpu.memory_space<vmem>>, vector<8x2xi32>
    %c0_1 = arith.constant 0 : index
    %c0_2 = arith.constant 0 : index
    %1 = vector.load %arg2[%c0_1, %c0_2] : memref<256x32xbf16, #tpu.memory_space<vmem>>, vector<256x32xbf16>
    %2 = tpu.iota {dimensions = array<i32: 1>} : vector<8x256xi32>
    %cst = arith.constant 0.000000e+00 : f32
    %3 = vector.broadcast %cst : f32 to vector<8x128xf32>
    %4 = vector.extract_strided_slice %0 {offsets = [0, 0], sizes = [8, 1], strides = [1, 1]} : vector<8x2xi32> to vector<8x1xi32>
    %5 = vector.broadcast %4 : vector<8x1xi32> to vector<8x256xi32>
    %6 = arith.cmpi eq, %2, %5 : vector<8x256xi32>
    %7 = arith.extui %6 : vector<8x256xi1> to vector<8x256xi32>
    %8 = arith.sitofp %7 : vector<8x256xi32> to vector<8x256xf32>
    %9 = arith.truncf %8 : vector<8x256xf32> to vector<8x256xbf16>
    %cst_3 = arith.constant dense<0.000000e+00> : vector<8x32xf32>
    %10 = tpu.matmul %9, %1, %cst_3 {dimension_numbers = #tpu.dot_dimension_numbers<[1], [0], [0], [1], [0, 0, 1, 1], [], []>} : vector<8x256xbf16>, vector<256x32xbf16>, vector<8x32xf32> -> vector<8x32xf32>
    %11 = arith.truncf %10 : vector<8x32xf32> to vector<8x32xbf16>
    %c0_4 = arith.constant 0 : index
    %c0_5 = arith.constant 0 : index
    %c0_6 = arith.constant 0 : index
    %12 = vector.load %arg3[%c0_4, %c0_5, %c0_6] : memref<2x32x128xbf16, #tpu.memory_space<vmem>>, vector<1x32x128xbf16>
    %13 = vector.shape_cast %12 : vector<1x32x128xbf16> to vector<32x128xbf16>
    %cst_7 = arith.constant dense<0.000000e+00> : vector<8x128xf32>
    %14 = tpu.matmul %11, %13, %cst_7 {dimension_numbers = #tpu.dot_dimension_numbers<[1], [0], [0], [1], [0, 0, 1, 1], [], []>} : vector<8x32xbf16>, vector<32x128xbf16>, vector<8x128xf32> -> vector<8x128xf32>
    %15 = arith.addf %3, %14 : vector<8x128xf32>
    %16 = vector.extract_strided_slice %0 {offsets = [0, 1], sizes = [8, 1], strides = [1, 1]} : vector<8x2xi32> to vector<8x1xi32>
    %17 = vector.broadcast %16 : vector<8x1xi32> to vector<8x256xi32>
    %18 = arith.cmpi eq, %2, %17 : vector<8x256xi32>
    %19 = arith.extui %18 : vector<8x256xi1> to vector<8x256xi32>
    %20 = arith.sitofp %19 : vector<8x256xi32> to vector<8x256xf32>
    %21 = arith.truncf %20 : vector<8x256xf32> to vector<8x256xbf16>
    %cst_8 = arith.constant dense<0.000000e+00> : vector<8x32xf32>
    %22 = tpu.matmul %21, %1, %cst_8 {dimension_numbers = #tpu.dot_dimension_numbers<[1], [0], [0], [1], [0, 0, 1, 1], [], []>} : vector<8x256xbf16>, vector<256x32xbf16>, vector<8x32xf32> -> vector<8x32xf32>
    %23 = arith.truncf %22 : vector<8x32xf32> to vector<8x32xbf16>
    %c1 = arith.constant 1 : index
    %c0_9 = arith.constant 0 : index
    %c0_10 = arith.constant 0 : index
    %24 = vector.load %arg3[%c1, %c0_9, %c0_10] : memref<2x32x128xbf16, #tpu.memory_space<vmem>>, vector<1x32x128xbf16>
    %25 = vector.shape_cast %24 : vector<1x32x128xbf16> to vector<32x128xbf16>
    %cst_11 = arith.constant dense<0.000000e+00> : vector<8x128xf32>
    %26 = tpu.matmul %23, %25, %cst_11 {dimension_numbers = #tpu.dot_dimension_numbers<[1], [0], [0], [1], [0, 0, 1, 1], [], []>} : vector<8x32xbf16>, vector<32x128xbf16>, vector<8x128xf32> -> vector<8x128xf32>
    %27 = arith.addf %15, %26 : vector<8x128xf32>
    %c0_12 = arith.constant 0 : index
    %c0_13 = arith.constant 0 : index
    %28 = vector.load %arg4[%c0_12, %c0_13] : memref<1x128xf32, #tpu.memory_space<vmem>>, vector<1x128xf32>
    %29 = vector.broadcast %28 : vector<1x128xf32> to vector<8x128xf32>
    %30 = arith.addf %27, %29 : vector<8x128xf32>
    %cst_14 = arith.constant 0.000000e+00 : f32
    %31 = vector.broadcast %cst_14 : f32 to vector<8x128xf32>
    %32 = arith.maximumf %30, %31 : vector<8x128xf32>
    %33 = arith.truncf %32 : vector<8x128xf32> to vector<8x128xbf16>
    %c0_15 = arith.constant 0 : index
    %c0_16 = arith.constant 0 : index
    %34 = vector.load %arg5[%c0_15, %c0_16] : memref<128x256xbf16, #tpu.memory_space<vmem>>, vector<128x256xbf16>
    %cst_17 = arith.constant dense<0.000000e+00> : vector<8x256xf32>
    %35 = tpu.matmul %33, %34, %cst_17 {dimension_numbers = #tpu.dot_dimension_numbers<[1], [0], [0], [1], [0, 0, 1, 1], [], []>} : vector<8x128xbf16>, vector<128x256xbf16>, vector<8x256xf32> -> vector<8x256xf32>
    %c0_18 = arith.constant 0 : index
    %c0_19 = arith.constant 0 : index
    %36 = vector.load %arg6[%c0_18, %c0_19] : memref<1x256xf32, #tpu.memory_space<vmem>>, vector<1x256xf32>
    %37 = vector.broadcast %36 : vector<1x256xf32> to vector<8x256xf32>
    %38 = arith.addf %35, %37 : vector<8x256xf32>
    %cst_20 = arith.constant dense<0xFF800000> : vector<8xf32>
    %39 = vector.multi_reduction <maximumf>, %38, %cst_20 [1] : vector<8x256xf32> to vector<8xf32>
    %40 = vector.shape_cast %39 : vector<8xf32> to vector<8x1xf32>
    %41 = vector.broadcast %40 : vector<8x1xf32> to vector<8x256xf32>
    %42 = arith.subf %38, %41 : vector<8x256xf32>
    %43 = math.exp %42 : vector<8x256xf32>
    %cst_21 = arith.constant dense<0.000000e+00> : vector<8xf32>
    %44 = vector.multi_reduction <add>, %43, %cst_21 [1] : vector<8x256xf32> to vector<8xf32>
    %45 = vector.shape_cast %44 : vector<8xf32> to vector<8x1xf32>
    %46 = math.log %45 : vector<8x1xf32>
    %47 = vector.broadcast %46 : vector<8x1xf32> to vector<8x256xf32>
    %48 = arith.subf %42, %47 : vector<8x256xf32>
    %c0_22 = arith.constant 0 : index
    %c0_23 = arith.constant 0 : index
    %49 = vector.load %arg7[%c0_22, %c0_23] : memref<8x256xf32, #tpu.memory_space<vmem>>, vector<8x256xf32>
    tpu.vector_store %arg7[%c0_22, %c0_23], %48 {strides = array<i32>} : memref<8x256xf32, #tpu.memory_space<vmem>>, vector<8x256xf32>,
    return
  }
  func.func @transform_0(%arg0: i32) -> (i32, i32) {
    %c0_i32 = arith.constant 0 : i32
    %c0_i32_0 = arith.constant 0 : i32
    return %arg0, %c0_i32 : i32, i32
  }
  func.func @transform_1(%arg0: i32) -> (i32, i32) {
    %c0_i32 = arith.constant 0 : i32
    %c0_i32_0 = arith.constant 0 : i32
    %c0_i32_1 = arith.constant 0 : i32
    return %c0_i32, %c0_i32_0 : i32, i32
  }
  func.func @transform_2(%arg0: i32) -> (i32, i32, i32) {
    %c0_i32 = arith.constant 0 : i32
    %c0_i32_0 = arith.constant 0 : i32
    %c0_i32_1 = arith.constant 0 : i32
    %c0_i32_2 = arith.constant 0 : i32
    return %c0_i32, %c0_i32_0, %c0_i32_1 : i32, i32, i32
  }
  func.func @transform_3(%arg0: i32) -> (i32, i32) {
    %c0_i32 = arith.constant 0 : i32
    %c0_i32_0 = arith.constant 0 : i32
    %c0_i32_1 = arith.constant 0 : i32
    return %c0_i32, %c0_i32_0 : i32, i32
  }
  func.func @transform_4(%arg0: i32) -> (i32, i32) {
    %c0_i32 = arith.constant 0 : i32
    %c0_i32_0 = arith.constant 0 : i32
    %c0_i32_1 = arith.constant 0 : i32
    return %c0_i32, %c0_i32_0 : i32, i32
  }
  func.func @transform_5(%arg0: i32) -> (i32, i32) {
    %c0_i32 = arith.constant 0 : i32
    %c0_i32_0 = arith.constant 0 : i32
    %c0_i32_1 = arith.constant 0 : i32
    return %c0_i32, %c0_i32_0 : i32, i32
  }
  func.func @transform_6(%arg0: i32) -> (i32, i32) {
    %c0_i32 = arith.constant 0 : i32
    %c0_i32_0 = arith.constant 0 : i32
    return %arg0, %c0_i32 : i32, i32
  }
}

</mosaic_0001>

<llo_original>
// kernel: tpu_custom_call.1
$region0: #{tpu_custom_call.1}
  #allocation0 [shape = 'u32[]', space=smem, size = 0x4, offset = 0x4, fixed_abs, tag = 'smem constant byte address 0x4 - core index']
  #allocation1 [shape = 'u32[144,128]{1,0:T(1,128)}', space=vmem, size = 0x12000, scoped, tag = 'internal scratch']
  %s0 = inlined_call_operand.vmem [shape: s32[8,2], index: 0, kind: input, shape index: {}]
  %s1 = inlined_call_operand.vmem [shape: bf16[256,32], index: 1, kind: input, shape index: {}]
  %s2 = inlined_call_operand.vmem [shape: bf16[2,32,128], index: 2, kind: input, shape index: {}]
  %s3 = inlined_call_operand.vmem [shape: f32[1,128], index: 3, kind: input, shape index: {}]
  %s4 = inlined_call_operand.vmem [shape: bf16[128,256], index: 4, kind: input, shape index: {}]
  %s5 = inlined_call_operand.vmem [shape: f32[1,256], index: 5, kind: input, shape index: {}]
  %s6 = inlined_call_operand.hbm [shape: f32[8,256], index: 6, kind: output, shape index: {}]
  %s7 = sld [smem:[#allocation0]]
  $region34: #{tpu_custom_call.1} parent=0
    _
  %s9 = ssub.s32 1, %s7
  %s10 = scalar_select 0, %s9, %s7
  $region1: #{tpu_custom_call.1} parent=0
    #allocation2 [shape = 'u8[8192]{0}', space=vmem, size = 0x2000, scoped, tag = 'output window, operand 0, single buffered']
    #allocation3 [shape = 's32[1]{0}', space=sflag, size = 0x4, scoped, tag = 'scoped memory for tpu_custom_call.1']
    %11 = vsyncpa [#allocation3], 0
    // Predicated region
    $region2: #{tpu_custom_call.1} parent=1 // pred_check
      _
    $region3: #{tpu_custom_call.1} parent=1 // pred_check_branch
      %13 = sbr.rel (0) target = $region5
    $region4: #{tpu_custom_call.1} parent=1 // pred_region
      _
    $region5: #{tpu_custom_call.1} parent=1 // pred_fallthru
      _
    // Predicated region
    $region6: #{tpu_custom_call.1} parent=1 // pred_check
      _
    $region7: #{tpu_custom_call.1} parent=1 // pred_check_branch
      %15 = sbr.rel (0) target = $region9
    $region8: #{tpu_custom_call.1} parent=1 // pred_region
      _
    $region9: #{tpu_custom_call.1} parent=1 // pred_fallthru
      _
    // Predicated region
    $region10: #{tpu_custom_call.1} parent=1 // pred_check
      _
    $region11: #{tpu_custom_call.1} parent=1 // pred_check_branch
      %17 = sbr.rel (0) target = $region13
    $region12: #{tpu_custom_call.1} parent=1 // pred_region
      _
    $region13: #{tpu_custom_call.1} parent=1 // pred_fallthru
      _
    // Predicated region
    $region14: #{tpu_custom_call.1} parent=1 // pred_check
      _
    $region15: #{tpu_custom_call.1} parent=1 // pred_check_branch
      %19 = sbr.rel (0) target = $region17
    $region16: #{tpu_custom_call.1} parent=1 // pred_region
      _
    $region17: #{tpu_custom_call.1} parent=1 // pred_fallthru
      _
    // Predicated region
    $region18: #{tpu_custom_call.1} parent=1 // pred_check
      _
    $region19: #{tpu_custom_call.1} parent=1 // pred_check_branch
      %21 = sbr.rel (0) target = $region21
    $region20: #{tpu_custom_call.1} parent=1 // pred_region
      _
    $region21: #{tpu_custom_call.1} parent=1 // pred_fallthru
      _
    // Predicated region
    $region22: #{tpu_custom_call.1} parent=1 // pred_check
      _
    $region23: #{tpu_custom_call.1} parent=1 // pred_check_branch
      %23 = sbr.rel (0) target = $region25
    $region24: #{tpu_custom_call.1} parent=1 // pred_region
      _
    $region25: #{tpu_custom_call.1} parent=1 // pred_fallthru
      _
    %v25 = vld [vmem:[%s0] sm:$0xff]
    %v26 = vld [vmem:[%s1] sm:$0xf]
    %v27 = vld [vmem:[%s1 + $0x4] sm:$0xf]
    %v28 = vld [vmem:[%s1 + $0x8] sm:$0xf]
    %v29 = vld [vmem:[%s1 + $0xc] sm:$0xf]
    %v30 = vld [vmem:[%s1 + $0x10] sm:$0xf]
    %v31 = vld [vmem:[%s1 + $0x14] sm:$0xf]
    %v32 = vld [vmem:[%s1 + $0x18] sm:$0xf]
    %v33 = vld [vmem:[%s1 + $0x1c] sm:$0xf]
    %v34 = vld [vmem:[%s1 + $0x20] sm:$0xf]
    %v35 = vld [vmem:[%s1 + $0x24] sm:$0xf]
    %v36 = vld [vmem:[%s1 + $0x28] sm:$0xf]
    %v37 = vld [vmem:[%s1 + $0x2c] sm:$0xf]
    %v38 = vld [vmem:[%s1 + $0x30] sm:$0xf]
    %v39 = vld [vmem:[%s1 + $0x34] sm:$0xf]
    %v40 = vld [vmem:[%s1 + $0x38] sm:$0xf]
    %v41 = vld [vmem:[%s1 + $0x3c] sm:$0xf]
    %v42 = vld [vmem:[%s1 + $0x40] sm:$0xf]
    %v43 = vld [vmem:[%s1 + $0x44] sm:$0xf]
    %v44 = vld [vmem:[%s1 + $0x48] sm:$0xf]
    %v45 = vld [vmem:[%s1 + $0x4c] sm:$0xf]
    %v46 = vld [vmem:[%s1 + $0x50] sm:$0xf]
    %v47 = vld [vmem:[%s1 + $0x54] sm:$0xf]
    %v48 = vld [vmem:[%s1 + $0x58] sm:$0xf]
    %v49 = vld [vmem:[%s1 + $0x5c] sm:$0xf]
    %v50 = vld [vmem:[%s1 + $0x60] sm:$0xf]
    %v51 = vld [vmem:[%s1 + $0x64] sm:$0xf]
    %v52 = vld [vmem:[%s1 + $0x68] sm:$0xf]
    %v53 = vld [vmem:[%s1 + $0x6c] sm:$0xf]
    %v54 = vld [vmem:[%s1 + $0x70] sm:$0xf]
    %v55 = vld [vmem:[%s1 + $0x74] sm:$0xf]
    %v56 = vld [vmem:[%s1 + $0x78] sm:$0xf]
    %v57 = vld [vmem:[%s1 + $0x7c] sm:$0xf]
    %v58 = vlaneseq
    %v59 = vand.u32 %v58, 127
    %v60 = vadd.s32 %v59, 128
    %61 = vset.pattern.permute.xlu0 0
    %62 = vperm.xlu0 %61, %v25
    %v63 = vpop.permute.xlu0 %62
    %vm64 = vcmp.eq.s32.totalorder %v59, %v63
    %vm65 = vcmp.eq.s32.totalorder %v60, %v63
    %v66 = vsel %vm64, 1, 0
    %v67 = vsel %vm65, 1, 0
    %v68 = vcvt.s32.f32 %v66
    %v69 = vcvt.s32.f32 %v67
    %v70 = vpack.c.bf16 %v68, %v68
    %v71 = vpack.c.bf16 %v69, %v69
    %v104 = vunpack.c.l.b16 %v26
    %v105 = vunpack.c.l.b16 %v27
    %v106 = vunpack.c.l.b16 %v28
    %v107 = vunpack.c.l.b16 %v29
    %v108 = vunpack.c.l.b16 %v30
    %v109 = vunpack.c.l.b16 %v31
    %v110 = vunpack.c.l.b16 %v32
    %v111 = vunpack.c.l.b16 %v33
    %v112 = vunpack.c.l.b16 %v34
    %v113 = vunpack.c.l.b16 %v35
    %v114 = vunpack.c.l.b16 %v36
    %v115 = vunpack.c.l.b16 %v37
    %v116 = vunpack.c.l.b16 %v38
    %v117 = vunpack.c.l.b16 %v39
    %v118 = vunpack.c.l.b16 %v40
    %v119 = vunpack.c.l.b16 %v41
    %v120 = vunpack.c.l.b16 %v42
    %v121 = vunpack.c.l.b16 %v43
    %v122 = vunpack.c.l.b16 %v44
    %v123 = vunpack.c.l.b16 %v45
    %v124 = vunpack.c.l.b16 %v46
    %v125 = vunpack.c.l.b16 %v47
    %v126 = vunpack.c.l.b16 %v48
    %v127 = vunpack.c.l.b16 %v49
    %v128 = vunpack.c.l.b16 %v50
    %v129 = vunpack.c.l.b16 %v51
    %v130 = vunpack.c.l.b16 %v52
    %v131 = vunpack.c.l.b16 %v53
    %v132 = vunpack.c.l.b16 %v54
    %v133 = vunpack.c.l.b16 %v55
    %v134 = vunpack.c.l.b16 %v56
    %v135 = vunpack.c.l.b16 %v57
    %v136 = vpack.c.b16 %v105, %v104
    %v137 = vpack.c.b16 %v107, %v106
    %v138 = vpack.c.b16 %v109, %v108
    %v139 = vpack.c.b16 %v111, %v110
    %v140 = vpack.c.b16 %v113, %v112
    %v141 = vpack.c.b16 %v115, %v114
    %v142 = vpack.c.b16 %v117, %v116
    %v143 = vpack.c.b16 %v119, %v118
    %v144 = vpack.c.b16 %v121, %v120
    %v145 = vpack.c.b16 %v123, %v122
    %v146 = vpack.c.b16 %v125, %v124
    %v147 = vpack.c.b16 %v127, %v126
    %v148 = vpack.c.b16 %v129, %v128
    %v149 = vpack.c.b16 %v131, %v130
    %v150 = vpack.c.b16 %v133, %v132
    %v151 = vpack.c.b16 %v135, %v134
    %168 = vmatprep.subr.bf16.mxu0 0
    %169 = vmatpush1.bf16.msra.mxu0 %v136
    %170 = vmatprep.subr.bf16.mxu0 0
    %171 = vmatpush1.bf16.msra.mxu0 %v137
    %172 = vmatprep.subr.bf16.mxu0 0
    %173 = vmatpush1.bf16.msra.mxu0 %v138
    %174 = vmatprep.subr.bf16.mxu0 0
    %175 = vmatpush1.bf16.msra.mxu0 %v139
    %176 = vmatprep.subr.bf16.mxu0 0
    %177 = vmatpush1.bf16.msra.mxu0 %v140
    %178 = vmatprep.subr.bf16.mxu0 0
    %179 = vmatpush1.bf16.msra.mxu0 %v141
    %180 = vmatprep.subr.bf16.mxu0 0
    %181 = vmatpush1.bf16.msra.mxu0 %v142
    %182 = vmatprep.subr.bf16.mxu0 0
    %183 = vmatpush1.bf16.msra.mxu0 %v143
    %184 = vmatprep.subr.bf16.mxu0 0
    %185 = vmatpush1.bf16.msra.mxu0 %v144
    %186 = vmatprep.subr.bf16.mxu0 0
    %187 = vmatpush1.bf16.msra.mxu0 %v145
    %188 = vmatprep.subr.bf16.mxu0 0
    %189 = vmatpush1.bf16.msra.mxu0 %v146
    %190 = vmatprep.subr.bf16.mxu0 0
    %191 = vmatpush1.bf16.msra.mxu0 %v147
    %192 = vmatprep.subr.bf16.mxu0 0
    %193 = vmatpush1.bf16.msra.mxu0 %v148
    %194 = vmatprep.subr.bf16.mxu0 0
    %195 = vmatpush1.bf16.msra.mxu0 %v149
    %196 = vmatprep.subr.bf16.mxu0 0
    %197 = vmatpush1.bf16.msra.mxu0 %v150
    %198 = vmatprep.subr.bf16.mxu0 0
    %199 = vmatpush1.bf16.msra.mxu0 %v151
    %200 = vmatprep.mubr.bf16.mxu0 %v71
    %201 = vmatmul.mubr.bf16.gmra.mrb[0].mxu0 %v70
    %v202 = vpop.f32.mrb[0].mxu0
    %v203 = vadd.f32 0.0, %v202
    %v204 = vpop.f32.mrb[0].mxu0
    %v205 = vpop.f32.mrb[0].mxu0
    %v206 = vpop.f32.mrb[0].mxu0
    %207 = vdwg.mxu0
    %v208 = vpack.c.bf16 %v203, %v203
    %v209 = vld [vmem:[%s2] sm:$0xf]
    %v210 = vld [vmem:[%s2 + $0x4] sm:$0xf]
    %v211 = vld [vmem:[%s2 + $0x8] sm:$0xf]
    %v212 = vld [vmem:[%s2 + $0xc] sm:$0xf]
    %213 = vset.pattern.permute.xlu0 1
    %214 = vperm.xlu0 %213, %v25
    %v215 = vpop.permute.xlu0 %214
    %vm216 = vcmp.eq.s32.totalorder %v59, %v215
    %vm217 = vcmp.eq.s32.totalorder %v60, %v215
    %v218 = vsel %vm216, 1, 0
    %v219 = vsel %vm217, 1, 0
    %v220 = vcvt.s32.f32 %v218
    %v221 = vcvt.s32.f32 %v219
    %v222 = vpack.c.bf16 %v220, %v220
    %v223 = vpack.c.bf16 %v221, %v221
    %224 = vmatprep.subr.bf16.mxu0 0
    %225 = vmatpush1.bf16.msra.mxu0 %v136
    %226 = vmatprep.subr.bf16.mxu0 0
    %227 = vmatpush1.bf16.msra.mxu0 %v137
    %228 = vmatprep.subr.bf16.mxu0 0
    %229 = vmatpush1.bf16.msra.mxu0 %v138
    %230 = vmatprep.subr.bf16.mxu0 0
    %231 = vmatpush1.bf16.msra.mxu0 %v139
    %232 = vmatprep.subr.bf16.mxu0 0
    %233 = vmatpush1.bf16.msra.mxu0 %v140
    %234 = vmatprep.subr.bf16.mxu0 0
    %235 = vmatpush1.bf16.msra.mxu0 %v141
    %236 = vmatprep.subr.bf16.mxu0 0
    %237 = vmatpush1.bf16.msra.mxu0 %v142
    %238 = vmatprep.subr.bf16.mxu0 0
    %239 = vmatpush1.bf16.msra.mxu0 %v143
    %240 = vmatprep.subr.bf16.mxu0 0
    %241 = vmatpush1.bf16.msra.mxu0 %v144
    %242 = vmatprep.subr.bf16.mxu0 0
    %243 = vmatpush1.bf16.msra.mxu0 %v145
    %244 = vmatprep.subr.bf16.mxu0 0
    %245 = vmatpush1.bf16.msra.mxu0 %v146
    %246 = vmatprep.subr.bf16.mxu0 0
    %247 = vmatpush1.bf16.msra.mxu0 %v147
    %248 = vmatprep.subr.bf16.mxu0 0
    %249 = vmatpush1.bf16.msra.mxu0 %v148
    %250 = vmatprep.subr.bf16.mxu0 0
    %251 = vmatpush1.bf16.msra.mxu0 %v149
    %252 = vmatprep.subr.bf16.mxu0 0
    %253 = vmatpush1.bf16.msra.mxu0 %v150
    %254 = vmatprep.subr.bf16.mxu0 0
    %255 = vmatpush1.bf16.msra.mxu0 %v151
    %256 = vmatprep.mubr.bf16.mxu0 %v223
    %257 = vmatmul.mubr.bf16.gmra.mrb[0].mxu0 %v222
    %v258 = vpop.f32.mrb[0].mxu0
    %v259 = vadd.f32 0.0, %v258
    %v260 = vpop.f32.mrb[0].mxu0
    %v261 = vpop.f32.mrb[0].mxu0
    %v262 = vpop.f32.mrb[0].mxu0
    %263 = vdwg.mxu0
    %v264 = vpack.c.bf16 %v259, %v259
    %s265 = scalar_lea.vmem %s2, 16
    %v266 = vld [vmem:[%s265] sm:$0xf]
    %v267 = vld [vmem:[%s265 + $0x4] sm:$0xf]
    %v268 = vld [vmem:[%s265 + $0x8] sm:$0xf]
    %v269 = vld [vmem:[%s265 + $0xc] sm:$0xf]
    %v274 = vunpack.c.l.b16 %v266
    %v275 = vunpack.c.l.b16 %v267
    %v276 = vunpack.c.l.b16 %v268
    %v277 = vunpack.c.l.b16 %v269
    %v278 = vpack.c.b16 %v275, %v274
    %v279 = vpack.c.b16 %v277, %v276
    %vm282 = vcmask 261120
    %v284 = vsel %vm282, %v264, 0
    %286 = vmatprep.subr.bf16.mxu0 0
    %287 = vmatpush1.bf16.msra.mxu0 %v278
    %288 = vmatprep.subr.bf16.mxu0 0
    %289 = vmatpush1.bf16.msra.mxu0 %v279
    %290 = vmatprep.subr.bf16.mxu0 0
    %291 = vmatpush1.bf16.msra.mxu0 0
    %292 = vmatprep.subr.bf16.mxu0 0
    %293 = vmatpush1.bf16.msra.mxu0 0
    %294 = vmatprep.subr.bf16.mxu0 0
    %295 = vmatpush1.bf16.msra.mxu0 0
    %296 = vmatprep.subr.bf16.mxu0 0
    %297 = vmatpush1.bf16.msra.mxu0 0
    %298 = vmatprep.subr.bf16.mxu0 0
    %299 = vmatpush1.bf16.msra.mxu0 0
    %300 = vmatprep.subr.bf16.mxu0 0
    %301 = vmatpush1.bf16.msra.mxu0 0
    %302 = vmatprep.subr.bf16.mxu0 0
    %303 = vmatpush1.bf16.msra.mxu0 0
    %304 = vmatprep.subr.bf16.mxu0 0
    %305 = vmatpush1.bf16.msra.mxu0 0
    %306 = vmatprep.subr.bf16.mxu0 0
    %307 = vmatpush1.bf16.msra.mxu0 0
    %308 = vmatprep.subr.bf16.mxu0 0
    %309 = vmatpush1.bf16.msra.mxu0 0
    %310 = vmatprep.subr.bf16.mxu0 0
    %311 = vmatpush1.bf16.msra.mxu0 0
    %312 = vmatprep.subr.bf16.mxu0 0
    %313 = vmatpush1.bf16.msra.mxu0 0
    %314 = vmatprep.subr.bf16.mxu0 0
    %315 = vmatpush1.bf16.msra.mxu0 0
    %316 = vmatprep.subr.bf16.mxu0 0
    %317 = vmatpush1.bf16.msra.mxu0 0
    %318 = vmatprep.mubr.bf16.mxu0 0
    %319 = vmatmul.mubr.bf16.gmra.mrb[0].mxu0 %v284
    %v320 = vpop.f32.mrb[0].mxu0
    %v321 = vadd.f32 0.0, %v320
    %v322 = vpop.f32.mrb[0].mxu0
    %v323 = vpop.f32.mrb[0].mxu0
    %v324 = vpop.f32.mrb[0].mxu0
    %325 = vdwg.mxu0
    %v330 = vunpack.c.l.b16 %v209
    %v331 = vunpack.c.l.b16 %v210
    %v332 = vunpack.c.l.b16 %v211
    %v333 = vunpack.c.l.b16 %v212
    %v334 = vpack.c.b16 %v331, %v330
    %v335 = vpack.c.b16 %v333, %v332
    %v339 = vsel %vm282, %v208, 0
    %341 = vmatprep.subr.bf16.mxu0 0
    %342 = vmatpush1.bf16.msra.mxu0 %v334
    %343 = vmatprep.subr.bf16.mxu0 0
    %344 = vmatpush1.bf16.msra.mxu0 %v335
    %345 = vmatprep.subr.bf16.mxu0 0
    %346 = vmatpush1.bf16.msra.mxu0 0
    %347 = vmatprep.subr.bf16.mxu0 0
    %348 = vmatpush1.bf16.msra.mxu0 0
    %349 = vmatprep.subr.bf16.mxu0 0
    %350 = vmatpush1.bf16.msra.mxu0 0
    %351 = vmatprep.subr.bf16.mxu0 0
    %352 = vmatpush1.bf16.msra.mxu0 0
    %353 = vmatprep.subr.bf16.mxu0 0
    %354 = vmatpush1.bf16.msra.mxu0 0
    %355 = vmatprep.subr.bf16.mxu0 0
    %356 = vmatpush1.bf16.msra.mxu0 0
    %357 = vmatprep.subr.bf16.mxu0 0
    %358 = vmatpush1.bf16.msra.mxu0 0
    %359 = vmatprep.subr.bf16.mxu0 0
    %360 = vmatpush1.bf16.msra.mxu0 0
    %361 = vmatprep.subr.bf16.mxu0 0
    %362 = vmatpush1.bf16.msra.mxu0 0
    %363 = vmatprep.subr.bf16.mxu0 0
    %364 = vmatpush1.bf16.msra.mxu0 0
    %365 = vmatprep.subr.bf16.mxu0 0
    %366 = vmatpush1.bf16.msra.mxu0 0
    %367 = vmatprep.subr.bf16.mxu0 0
    %368 = vmatpush1.bf16.msra.mxu0 0
    %369 = vmatprep.subr.bf16.mxu0 0
    %370 = vmatpush1.bf16.msra.mxu0 0
    %371 = vmatprep.subr.bf16.mxu0 0
    %372 = vmatpush1.bf16.msra.mxu0 0
    %373 = vmatprep.mubr.bf16.mxu0 0
    %374 = vmatmul.mubr.bf16.gmra.mrb[0].mxu0 %v339
    %v375 = vpop.f32.mrb[0].mxu0
    %v376 = vadd.f32 %v321, %v375
    %v377 = vpop.f32.mrb[0].mxu0
    %v378 = vpop.f32.mrb[0].mxu0
    %v379 = vpop.f32.mrb[0].mxu0
    %380 = vdwg.mxu0
    %v381 = vld [vmem:[%s3] sm:$0x1]
    %v383 = vlaneseq
    %v384 = vshrl.u32 %v383, 7
    %v385 = vsub.s32 0, %v384
    %v386 = vrot.slane %v381, %v385
    %v388 = vadd.f32 %v376, %v386
    %v389 = vmax.f32 %v388, 0.0
    %v390 = vpack.c.bf16 %v389, %v389
    %v391 = vld [vmem:[%s4] sm:$0xff]
    %v392 = vld [vmem:[%s4 + $0x8] sm:$0xff]
    %v393 = vld [vmem:[%s4 + $0x10] sm:$0xff]
    %v394 = vld [vmem:[%s4 + $0x18] sm:$0xff]
    %v395 = vld [vmem:[%s4 + $0x20] sm:$0xff]
    %v396 = vld [vmem:[%s4 + $0x28] sm:$0xff]
    %v397 = vld [vmem:[%s4 + $0x30] sm:$0xff]
    %v398 = vld [vmem:[%s4 + $0x38] sm:$0xff]
    %v399 = vld [vmem:[%s4 + $0x40] sm:$0xff]
    %v400 = vld [vmem:[%s4 + $0x48] sm:$0xff]
    %v401 = vld [vmem:[%s4 + $0x50] sm:$0xff]
    %v402 = vld [vmem:[%s4 + $0x58] sm:$0xff]
    %v403 = vld [vmem:[%s4 + $0x60] sm:$0xff]
    %v404 = vld [vmem:[%s4 + $0x68] sm:$0xff]
    %v405 = vld [vmem:[%s4 + $0x70] sm:$0xff]
    %v406 = vld [vmem:[%s4 + $0x78] sm:$0xff]
    %v407 = vld [vmem:[%s5] sm:$0x3]
    %v409 = vlaneseq
    %v410 = vshrl.u32 %v409, 7
    %v411 = vsub.s32 0, %v410
    %v412 = vrot.slane %v407, %v411
    %v413 = vlaneseq
    %v414 = vshrl.u32 %v413, 7
    %v415 = vsub.s32 1, %v414
    %v416 = vrot.slane %v407, %v415
    %v435 = vunpack.c.l.b16 %v391
    %v436 = vunpack.c.h.b16 %v391
    %v437 = vunpack.c.l.b16 %v392
    %v438 = vunpack.c.h.b16 %v392
    %v439 = vunpack.c.l.b16 %v393
    %v440 = vunpack.c.h.b16 %v393
    %v441 = vunpack.c.l.b16 %v394
    %v442 = vunpack.c.h.b16 %v394
    %v443 = vunpack.c.l.b16 %v395
    %v444 = vunpack.c.h.b16 %v395
    %v445 = vunpack.c.l.b16 %v396
    %v446 = vunpack.c.h.b16 %v396
    %v447 = vunpack.c.l.b16 %v397
    %v448 = vunpack.c.h.b16 %v397
    %v449 = vunpack.c.l.b16 %v398
    %v450 = vunpack.c.h.b16 %v398
    %v451 = vunpack.c.l.b16 %v399
    %v452 = vunpack.c.h.b16 %v399
    %v453 = vunpack.c.l.b16 %v400
    %v454 = vunpack.c.h.b16 %v400
    %v455 = vunpack.c.l.b16 %v401
    %v456 = vunpack.c.h.b16 %v401
    %v457 = vunpack.c.l.b16 %v402
    %v458 = vunpack.c.h.b16 %v402
    %v459 = vunpack.c.l.b16 %v403
    %v460 = vunpack.c.h.b16 %v403
    %v461 = vunpack.c.l.b16 %v404
    %v462 = vunpack.c.h.b16 %v404
    %v463 = vunpack.c.l.b16 %v405
    %v464 = vunpack.c.h.b16 %v405
    %v465 = vunpack.c.l.b16 %v406
    %v466 = vunpack.c.h.b16 %v406
    %v467 = vpack.c.b16 %v437, %v435
    %v468 = vpack.c.b16 %v438, %v436
    %v469 = vpack.c.b16 %v441, %v439
    %v470 = vpack.c.b16 %v442, %v440
    %v471 = vpack.c.b16 %v445, %v443
    %v472 = vpack.c.b16 %v446, %v444
    %v473 = vpack.c.b16 %v449, %v447
    %v474 = vpack.c.b16 %v450, %v448
    %v475 = vpack.c.b16 %v453, %v451
    %v476 = vpack.c.b16 %v454, %v452
    %v477 = vpack.c.b16 %v457, %v455
    %v478 = vpack.c.b16 %v458, %v456
    %v479 = vpack.c.b16 %v461, %v459
    %v480 = vpack.c.b16 %v462, %v460
    %v481 = vpack.c.b16 %v465, %v463
    %v482 = vpack.c.b16 %v466, %v464
    %499 = vmatprep.subr.bf16.mxu0 %v468
    %500 = vmatpush1.bf16.msra.mxu0 %v467
    %501 = vmatprep.subr.bf16.mxu0 %v470
    %502 = vmatpush1.bf16.msra.mxu0 %v469
    %503 = vmatprep.subr.bf16.mxu0 %v472
    %504 = vmatpush1.bf16.msra.mxu0 %v471
    %505 = vmatprep.subr.bf16.mxu0 %v474
    %506 = vmatpush1.bf16.msra.mxu0 %v473
    %507 = vmatprep.subr.bf16.mxu0 %v476
    %508 = vmatpush1.bf16.msra.mxu0 %v475
    %509 = vmatprep.subr.bf16.mxu0 %v478
    %510 = vmatpush1.bf16.msra.mxu0 %v477
    %511 = vmatprep.subr.bf16.mxu0 %v480
    %512 = vmatpush1.bf16.msra.mxu0 %v479
    %513 = vmatprep.subr.bf16.mxu0 %v482
    %514 = vmatpush1.bf16.msra.mxu0 %v481
    %515 = vmatprep.subr.bf16.mxu0 0
    %516 = vmatpush1.bf16.msra.mxu0 0
    %517 = vmatprep.subr.bf16.mxu0 0
    %518 = vmatpush1.bf16.msra.mxu0 0
    %519 = vmatprep.subr.bf16.mxu0 0
    %520 = vmatpush1.bf16.msra.mxu0 0
    %521 = vmatprep.subr.bf16.mxu0 0
    %522 = vmatpush1.bf16.msra.mxu0 0
    %523 = vmatprep.subr.bf16.mxu0 0
    %524 = vmatpush1.bf16.msra.mxu0 0
    %525 = vmatprep.subr.bf16.mxu0 0
    %526 = vmatpush1.bf16.msra.mxu0 0
    %527 = vmatprep.subr.bf16.mxu0 0
    %528 = vmatpush1.bf16.msra.mxu0 0
    %529 = vmatprep.subr.bf16.mxu0 0
    %530 = vmatpush1.bf16.msra.mxu0 0
    %531 = vmatprep.mubr.bf16.mxu0 0
    %532 = vmatmul.mubr.bf16.gmra.mrb[0].mxu0 %v390
    %v533 = vpop.f32.mrb[0].mxu0
    %v534 = vadd.f32 %v412, %v533
    %v535 = vpop.f32.mrb[0].mxu0
    %v536 = vadd.f32 %v416, %v535
    %v537 = vpop.f32.mrb[0].mxu0
    %v538 = vpop.f32.mrb[0].mxu0
    %539 = vdwg.mxu0
    %v540 = vmax.f32 %v534, %v536
    %541 = vmax.xlane.f32.xlu0 %v540
    %v542 = vpop.xlane.xlu0 %541
    %v543 = vsub.f32 %v534, %v542
    %v544 = vsub.f32 %v536, %v542
    %v545 = vmul.f32 %v543, 1.442695
    %v546 = vpow.pop %v545
    %v547 = vmul.f32 %v544, 1.442695
    %v548 = vpow.pop %v547
    %v549 = vadd.f32 %v546, %v548
    %550 = vadd.xlane.f32.xlu0 %v549
    %v551 = vpop.xlane.xlu0 %550
    %v552 = vlog2.pop %v551
    %v553 = vmul.f32 %v552, 0.6931472
    %v554 = vsub.f32 %v543, %v553
    %v555 = vsub.f32 %v544, %v553
    %556 = vst [vmem:[#allocation2] sm:$0xff] %v554
    %557 = vst [vmem:[#allocation2 + $0x8] sm:$0xff] %v555
    // Predicated region
    $region26: #{tpu_custom_call.1} parent=1 // pred_check
      _
    $region27: #{tpu_custom_call.1} parent=1 // pred_check_branch
      %559 = sbr.rel (0) target = $region29
    $region28: #{tpu_custom_call.1} parent=1 // pred_region
      %s561 = ssub.s32 256, 256
      %562 = vsyncadd [#allocation3], %s561
      %s564 = sshll.u32 [#allocation2], 4
      %s565 = int_to_ptr.vmem [resolvable:$true] %s564
      %567 = dma.vmem_to_hbm [thread:$0]  %s565, 256, %s6, [#allocation3]
    $region29: #{tpu_custom_call.1} parent=1 // pred_fallthru
      _
    // Predicated region
    $region30: #{tpu_custom_call.1} parent=1 // pred_check
      _
    $region31: #{tpu_custom_call.1} parent=1 // pred_check_branch
      %569 = sbr.rel (0) target = $region33
    $region32: #{tpu_custom_call.1} parent=1 // pred_region
      %570 = dma.done [#allocation3], 256
    $region33: #{tpu_custom_call.1} parent=1 // pred_fallthru
      _
    %571 = vsyncpa [#allocation3], 1

</llo_original>
